<compile_context>
chip_gen: v6e
topology: v6e:2x2x1
jax: 0.10.0
libtpu: 0.0.40
codegen_flags: <defaults>
</compile_context>

<pallas_src>
import numpy as np
import jax
import jax.numpy as jnp
from jax.experimental import pallas as pl
from jax.experimental.pallas import tpu as pltpu


# ---------------------------------------------------------------------------
# Small helpers
# ---------------------------------------------------------------------------
def _ceil_div(a, b):
    return -(-a // b)


def _choose_tile_n(n, tile_n):
    """Pick the point-tile width (lane axis).

    Large tiles amortize the ~0.35us/step grid overhead and make the pe/z DMAs
    bandwidth-bound instead of latency-bound; cap so that >= 4 grid blocks
    remain (v7x shards the "parallel" axis across its 2 TensorCores and keeps
    the double-buffer pipeline busy)."""
    cap = 512 * max(1, _ceil_div(_ceil_div(n, 4), 512))
    return max(512, min(int(tile_n), cap))


# ---------------------------------------------------------------------------
# Parameter / encoding setup (plain-JAX glue)
# ---------------------------------------------------------------------------
def compute_resolution_nlevel(bounding_box, coarsest, finest, level_scale,
                              spatial_scaling=1.0):
    span = float(np.max(bounding_box[1] - bounding_box[0]))
    base_resolution = int(np.ceil(span * spatial_scaling / coarsest))
    n_levels = int(np.ceil(
        np.log2(span * spatial_scaling / finest / base_resolution)
        / np.log2(level_scale) + 1))
    return base_resolution, n_levels


def hash_encode_t(x01, tables, base_resolution, level_scale, *,
                  out_dtype=jnp.float32):
    """Multiresolution hash-grid encoding (Instant-NGP / tcnn "HashGrid"),
    emitted directly in the transposed, lane-dense layout the kernel wants.

    x01: (N, 3) in [0, 1];  tables: (L, T, F)  ->  pe_t (L*F, N) in out_dtype.

    # TODO(synk): the data-dependent hash-table gather has no clean Pallas TPU
    # equivalent (general VMEM dynamic gather); it stays in plain JAX glue,
    # structured as a single batched gather whose minor output dim is N
    # (lane-dense) rather than F=2.
    """
    L, T, F = tables.shape
    N = x01.shape[0]
    primes = np.array([1, 2654435761, 805459861], dtype=np.uint32)

    # Guard against uint32 wraparound for coordinates slightly outside the
    # bounding box (negative after normalization).
    x01 = jnp.clip(x01, 0.0, 1.0)

    idx_all, w_all = [], []
    for lvl in range(L):
        res = int(np.floor(base_resolution * (level_scale ** lvl)))
        pos = x01 * res
        pos0 = jnp.floor(pos)
        frac = pos - pos0
        pos0u = pos0.astype(jnp.uint32)
        for corner in range(8):
            offs = np.array([(corner >> d) & 1 for d in range(3)],
                            dtype=np.uint32)
            c = pos0u + offs[None, :]
            h = ((c[:, 0] * primes[0]) ^ (c[:, 1] * primes[1])
                 ^ (c[:, 2] * primes[2]))
            h = (h & jnp.uint32(T - 1)).astype(jnp.int32) + lvl * T
            w = jnp.prod(jnp.where(offs[None, :] == 1, frac, 1.0 - frac),
                         axis=-1)
            idx_all.append(h)                                   # (N,)
            w_all.append(w)                                     # (N,)

    idx = jnp.stack(idx_all, axis=0)                            # (L*8, N)
    w = jnp.stack(w_all, axis=0)                                # (L*8, N)

    # Single batched gather with the point axis minor (lane-dense output).
    tabs_t = tables.transpose(2, 0, 1).reshape(F, L * T)        # (F, L*T)
    g = jnp.take(tabs_t, idx, axis=1)                           # (F, L*8, N)
    feats = (w[None, :, :] * g).reshape(F, L, 8, N).sum(axis=2)  # (F, L, N)
    pe_t = feats.transpose(1, 0, 2).reshape(L * F, N)           # (L*F, N)
    return pe_t.astype(out_dtype)


# ---------------------------------------------------------------------------
# Pallas kernels: density_net MLP (2 hidden layers, ReLU) + softplus head.
# Transposed layout: feature channels on sublanes, points on the 128-lane axis.
# ---------------------------------------------------------------------------
def _mlp_core(pe, w0t, b0, w1t, b1, w2t, b2):
    # pe: (f_in, tile_n) f32;  wKt: (out, in);  bK: (out, 1)
    h = jnp.dot(w0t, pe, preferred_element_type=jnp.float32) + b0
    h = jnp.maximum(h, 0.0)                                     # ReLU
    h = jnp.dot(w1t, h, preferred_element_type=jnp.float32) + b1
    h = jnp.maximum(h, 0.0)                                     # ReLU
    z = jnp.dot(w2t, h, preferred_element_type=jnp.float32) + b2
    return z                                                    # (out_dim, tile_n)


def _softplus_row0(z):
    z0 = z[0:1, :]                                              # (1, tile_n)
    return jnp.maximum(z0, 0.0) + jnp.log1p(jnp.exp(-jnp.abs(z0)))


def _mlp_softplus_kernel(pe_ref, w0_ref, b0_ref, w1_ref, b1_ref,
                         w2_ref, b2_ref, dens_ref):
    pe = pe_ref[...].astype(jnp.float32)       # bf16 stream -> f32 accumulate
    z = _mlp_core(pe, w0_ref[...], b0_ref[...], w1_ref[...],
                  b1_ref[...], w2_ref[...], b2_ref[...])
    dens_ref[...] = _softplus_row0(z).astype(dens_ref.dtype)


def _mlp_softplus_z_kernel(pe_ref, w0_ref, b0_ref, w1_ref, b1_ref,
                           w2_ref, b2_ref, z_ref, dens_ref):
    pe = pe_ref[...].astype(jnp.float32)
    z = _mlp_core(pe, w0_ref[...], b0_ref[...], w1_ref[...],
                  b1_ref[...], w2_ref[...], b2_ref[...])
    z_ref[...] = z.astype(z_ref.dtype)
    dens_ref[...] = _softplus_row0(z).astype(dens_ref.dtype)


def density_net_pallas(pe_t, w0, b0, w1, b1, w2, b2, *, tile_n=4096,
                       return_z=True):
    """pe_t: (f_in, N) transposed (lane-dense) encoding, f32 or bf16.

    Returns density (N,) f32 [and z_t (out_dim, N) f32 in transposed layout]."""
    f_in, n = pe_t.shape
    width = w0.shape[1]
    out_dim = w2.shape[1]

    tile_n = _choose_tile_n(n, tile_n)
    n_blocks = _ceil_div(n, tile_n)
    n_pad = n_blocks * tile_n
    if n_pad != n:
        # Fallback only: inr_forward pre-pads the coordinates so the encoding
        # already arrives at the padded length and this branch is a no-op there.
        pe_t = jnp.pad(pe_t, ((0, 0), (0, n_pad - n)))

    # Transposed weights: (out, in) so the matmul N-dimension is tile_n (lane-dense).
    w0t, w1t, w2t = w0.T, w1.T, w2.T
    b0t = b0.reshape(width, 1)
    b1t = b1.reshape(width, 1)
    b2t = b2.reshape(out_dim, 1)

    def full_spec(shape):
        return pl.BlockSpec(shape, lambda i: (0, 0))            # VMEM-resident

    in_specs = [
        pl.BlockSpec((f_in, tile_n), lambda i: (0, i)),          # pe^T tile (streamed)
        full_spec((width, f_in)), full_spec((width, 1)),         # W0^T, b0
        full_spec((width, width)), full_spec((width, 1)),        # W1^T, b1
        full_spec((out_dim, width)), full_spec((out_dim, 1)),    # W2^T, b2
    ]
    dens_spec = pl.BlockSpec((1, tile_n), lambda i: (0, i))

    if return_z:
        out_shape = (jax.ShapeDtypeStruct((out_dim, n_pad), jnp.float32),
                     jax.ShapeDtypeStruct((1, n_pad), jnp.float32))
        out_specs = (pl.BlockSpec((out_dim, tile_n), lambda i: (0, i)),
                     dens_spec)
        kernel = _mlp_softplus_z_kernel
    else:
        out_shape = jax.ShapeDtypeStruct((1, n_pad), jnp.float32)
        out_specs = dens_spec
        kernel = _mlp_softplus_kernel

    # Raise the scoped-VMEM limit only when very large tiles are requested
    # (v5e default is 16 MiB; v6e/v7x 32 MiB).  Default tiles are far below.
    pad8 = lambda r: _ceil_div(r, 8) * 8
    stream_bytes = 2 * tile_n * (pad8(f_in) * pe_t.dtype.itemsize
                                 + pad8(1) * 4
                                 + (pad8(out_dim) * 4 if return_z else 0))
    vmem_limit = None
    if stream_bytes > (12 << 20):
        vmem_limit = min(int(stream_bytes * 1.5) + (2 << 20), 48 << 20)

    res = pl.pallas_call(
        kernel,
        out_shape=out_shape,
        grid_spec=pltpu.PrefetchScalarGridSpec(
            num_scalar_prefetch=0,
            grid=(n_blocks,),
            in_specs=in_specs,
            out_specs=out_specs),
        compiler_params=pltpu.CompilerParams(
            dimension_semantics=("parallel",),
            vmem_limit_bytes=vmem_limit),
        # If profiling ever shows the pe DMA still exposed at moderate tiles,
        # add pipeline_mode=pl.Buffered(3) to the pe^T BlockSpec only.
    )(pe_t, w0t, b0t, w1t, b1t, w2t, b2t)

    if return_z:
        z_t, dens = res
        return dens[0, :n], z_t[:, :n]
    return res[0, :n]


# ---------------------------------------------------------------------------
# Full INR forward
# ---------------------------------------------------------------------------
def inr_forward(x, bounding_box, tables, base_resolution, level_scale, params,
                *, training=False, tile_n=4096, transpose_outputs=True):
    """INR.forward (args.use_voxel=False, o_inr=False).

    eval:     density with shape x.shape[:-1]
    training: (density, pe, z); pe (N, L*F) and z (N, 1+n_features_z) when
              transpose_outputs=True (original module layout).  Pass
              transpose_outputs=False to keep the lane-dense (features, N)
              layout and skip two extra HBM transpose passes.
    """
    prefix_shape = x.shape[:-1]
    x01 = (x.reshape(-1, 3) - bounding_box[0]) / (bounding_box[1] - bounding_box[0])
    N = x01.shape[0]

    tile = _choose_tile_n(N, tile_n)
    n_pad = _ceil_div(N, tile) * tile
    if n_pad != N:
        # Pad the raw coordinates (12 B/pt) instead of the finished encoding
        # (40-64 B/pt); padded tail points are valid inputs sliced off below.
        x01 = jnp.pad(x01, ((0, n_pad - N), (0, 0)))

    # Eval hot path streams the encoding in bf16 (halves the dominant HBM read;
    # the MLP accumulates in f32).  Training keeps f32 because pe is returned.
    enc_dtype = jnp.float32 if training else jnp.bfloat16
    pe_t = hash_encode_t(x01, tables, base_resolution, level_scale,
                         out_dtype=enc_dtype)                    # (L*F, n_pad)

    if training:
        density, z_t = density_net_pallas(pe_t, *params, tile_n=tile,
                                          return_z=True)
        density = density[:N].reshape(prefix_shape)
        pe_t = pe_t[:, :N]
        z_t = z_t[:, :N]
        if transpose_outputs:
            return density, pe_t.T, z_t.T
        return density, pe_t, z_t

    density = density_net_pallas(pe_t, *params, tile_n=tile, return_z=False)
    return density[:N].reshape(prefix_shape)


if __name__ == "__main__":
    # --- deterministic "args" (small, consistent with the module) -----------
    coarsest_resolution = 4.0
    finest_resolution = 1.0
    level_scale = 1.5
    n_features_per_level = 2
    log2_hashmap_size = 8
    width = 32            # args.width
    depth = 2             # args.depth (n_hidden_layers)
    n_features_z = 15     # -> n_output_dims = 16

    bounding_box = jnp.array([[0.0, 0.0, 0.0],
                              [16.0, 16.0, 16.0]], dtype=jnp.float32)
    base_resolution, n_levels = compute_resolution_nlevel(
        np.asarray(bounding_box), coarsest_resolution, finest_resolution,
        level_scale, 1.0)
    f_in = n_levels * n_features_per_level
    out_dim = 1 + n_features_z

    key = jax.random.PRNGKey(0)
    k_tab, k_x, k_w0, k_b0, k_w1, k_b1, k_w2, k_b2 = jax.random.split(key, 8)

    # hash tables (Instant-NGP init: U[-1e-4, 1e-4])
    tables = jax.random.uniform(
        k_tab, (n_levels, 2 ** log2_hashmap_size, n_features_per_level),
        minval=-1e-4, maxval=1e-4, dtype=jnp.float32)

    def lin_init(kw, kb, fan_in, fan_out):
        lim = 1.0 / np.sqrt(fan_in)
        w = jax.random.uniform(kw, (fan_in, fan_out), minval=-lim, maxval=lim,
                               dtype=jnp.float32)
        b = jax.random.uniform(kb, (1, fan_out), minval=-lim, maxval=lim,
                               dtype=jnp.float32)
        return w, b

    w0, b0 = lin_init(k_w0, k_b0, f_in, width)
    w1, b1 = lin_init(k_w1, k_b1, width, width)
    w2, b2 = lin_init(k_w2, k_b2, width, out_dim)
    params = (w0, b0, w1, b1, w2, b2)

    # --- example input: (npoints, n_PSF, 3) coords inside the bounding box --
    # prefix shape (250, 4) -> N = 1000 points (not a tile multiple, so the
    # coordinate-padding path is exercised).
    x = jax.random.uniform(k_x, (250, 4, 3), minval=0.0, maxval=16.0,
                           dtype=jnp.float32)
    N = x.shape[0] * x.shape[1]

    fwd_train = jax.jit(lambda xx: inr_forward(
        xx, bounding_box, tables, base_resolution, level_scale, params,
        training=True))
    fwd_eval = jax.jit(lambda xx: inr_forward(
        xx, bounding_box, tables, base_resolution, level_scale, params,
        training=False))

    # training path (returns density, pe, z)
    density, pe, z = jax.block_until_ready(fwd_train(x))
    # eval path (density only, bf16 pe stream, no z writeback)
    density_eval = jax.block_until_ready(fwd_eval(x))

    assert density.shape == (250, 4)
    assert density_eval.shape == (250, 4)
    assert pe.shape == (N, f_in)
    assert z.shape == (N, out_dim)

    # --- pure-JAX reference for the Pallas portion (MLP + softplus) ---------
    h = jnp.maximum(pe @ w0 + b0, 0.0)
    h = jnp.maximum(h @ w1 + b1, 0.0)
    z_ref = h @ w2 + b2
    dens_ref = jax.nn.softplus(z_ref[:, 0])

    np.testing.assert_allclose(np.asarray(z), np.asarray(z_ref),
                               rtol=2e-2, atol=2e-2)
    np.testing.assert_allclose(np.asarray(density).reshape(-1),
                               np.asarray(dens_ref), rtol=2e-2, atol=2e-2)
    # eval path uses a bf16 encoding stream with f32 accumulation (documented
    # precision change); still well inside tolerance.
    np.testing.assert_allclose(np.asarray(density_eval).reshape(-1),
                               np.asarray(dens_ref), rtol=2e-2, atol=2e-2)

    print("KERNEL_OK")
</pallas_src>

<mosaic_0001>
module attributes {stable_mosaic.version = 11 : i64} {
  func.func @_mlp_softplus_z_kernel(%arg0: i32, %arg1: memref<10x512xf32, #tpu.memory_space<vmem>>, %arg2: memref<32x10xf32, #tpu.memory_space<vmem>>, %arg3: memref<32x1xf32, #tpu.memory_space<vmem>>, %arg4: memref<32x32xf32, #tpu.memory_space<vmem>>, %arg5: memref<32x1xf32, #tpu.memory_space<vmem>>, %arg6: memref<16x32xf32, #tpu.memory_space<vmem>>, %arg7: memref<16x1xf32, #tpu.memory_space<vmem>>, %arg8: memref<16x512xf32, #tpu.memory_space<vmem>>, %arg9: memref<1x512xf32, #tpu.memory_space<vmem>>) attributes {dimension_semantics = [#tpu.dimension_semantics<parallel>], iteration_bounds = array<i64: 2>, scalar_prefetch = 0 : i64, scratch_operands = 0 : i64, tpu.core_type = #tpu.core_type<tc>, window_params = [{transform_indices = @transform_0, window_bounds = array<i64: 10, 512>}, {pipeline_mode = #tpu.pipeline_mode<synchronous>, transform_indices = @transform_1, window_bounds = array<i64: 32, 10>}, {pipeline_mode = #tpu.pipeline_mode<synchronous>, transform_indices = @transform_2, window_bounds = array<i64: 32, 1>}, {pipeline_mode = #tpu.pipeline_mode<synchronous>, transform_indices = @transform_3, window_bounds = array<i64: 32, 32>}, {pipeline_mode = #tpu.pipeline_mode<synchronous>, transform_indices = @transform_4, window_bounds = array<i64: 32, 1>}, {pipeline_mode = #tpu.pipeline_mode<synchronous>, transform_indices = @transform_5, window_bounds = array<i64: 16, 32>}, {pipeline_mode = #tpu.pipeline_mode<synchronous>, transform_indices = @transform_6, window_bounds = array<i64: 16, 1>}, {transform_indices = @transform_7, window_bounds = array<i64: 16, 512>}, {transform_indices = @transform_8, window_bounds = array<i64: 1, 512>}]} {
    %c0 = arith.constant 0 : index
    %c0_0 = arith.constant 0 : index
    %0 = vector.load %arg1[%c0, %c0_0] : memref<10x512xf32, #tpu.memory_space<vmem>>, vector<10x512xf32>
    %c0_1 = arith.constant 0 : index
    %c0_2 = arith.constant 0 : index
    %1 = vector.load %arg2[%c0_1, %c0_2] : memref<32x10xf32, #tpu.memory_space<vmem>>, vector<32x10xf32>
    %c0_3 = arith.constant 0 : index
    %c0_4 = arith.constant 0 : index
    %2 = vector.load %arg3[%c0_3, %c0_4] : memref<32x1xf32, #tpu.memory_space<vmem>>, vector<32x1xf32>
    %c0_5 = arith.constant 0 : index
    %c0_6 = arith.constant 0 : index
    %3 = vector.load %arg4[%c0_5, %c0_6] : memref<32x32xf32, #tpu.memory_space<vmem>>, vector<32x32xf32>
    %c0_7 = arith.constant 0 : index
    %c0_8 = arith.constant 0 : index
    %4 = vector.load %arg5[%c0_7, %c0_8] : memref<32x1xf32, #tpu.memory_space<vmem>>, vector<32x1xf32>
    %c0_9 = arith.constant 0 : index
    %c0_10 = arith.constant 0 : index
    %5 = vector.load %arg6[%c0_9, %c0_10] : memref<16x32xf32, #tpu.memory_space<vmem>>, vector<16x32xf32>
    %c0_11 = arith.constant 0 : index
    %c0_12 = arith.constant 0 : index
    %6 = vector.load %arg7[%c0_11, %c0_12] : memref<16x1xf32, #tpu.memory_space<vmem>>, vector<16x1xf32>
    %cst = arith.constant dense<0.000000e+00> : vector<32x512xf32>
    %7 = tpu.matmul %1, %0, %cst {dimension_numbers = #tpu.dot_dimension_numbers<[1], [0], [0], [1], [0, 0, 1, 1], [], []>} : vector<32x10xf32>, vector<10x512xf32>, vector<32x512xf32> -> vector<32x512xf32>
    %8 = vector.broadcast %2 : vector<32x1xf32> to vector<32x512xf32>
    %9 = arith.addf %7, %8 : vector<32x512xf32>
    %cst_13 = arith.constant 0.000000e+00 : f32
    %10 = vector.broadcast %cst_13 : f32 to vector<32x512xf32>
    %11 = arith.maximumf %9, %10 : vector<32x512xf32>
    %cst_14 = arith.constant dense<0.000000e+00> : vector<32x512xf32>
    %12 = tpu.matmul %3, %11, %cst_14 {dimension_numbers = #tpu.dot_dimension_numbers<[1], [0], [0], [1], [0, 0, 1, 1], [], []>} : vector<32x32xf32>, vector<32x512xf32>, vector<32x512xf32> -> vector<32x512xf32>
    %13 = vector.broadcast %4 : vector<32x1xf32> to vector<32x512xf32>
    %14 = arith.addf %12, %13 : vector<32x512xf32>
    %cst_15 = arith.constant 0.000000e+00 : f32
    %15 = vector.broadcast %cst_15 : f32 to vector<32x512xf32>
    %16 = arith.maximumf %14, %15 : vector<32x512xf32>
    %cst_16 = arith.constant dense<0.000000e+00> : vector<16x512xf32>
    %17 = tpu.matmul %5, %16, %cst_16 {dimension_numbers = #tpu.dot_dimension_numbers<[1], [0], [0], [1], [0, 0, 1, 1], [], []>} : vector<16x32xf32>, vector<32x512xf32>, vector<16x512xf32> -> vector<16x512xf32>
    %18 = vector.broadcast %6 : vector<16x1xf32> to vector<16x512xf32>
    %19 = arith.addf %17, %18 : vector<16x512xf32>
    %c0_17 = arith.constant 0 : index
    %c0_18 = arith.constant 0 : index
    %20 = vector.load %arg8[%c0_17, %c0_18] : memref<16x512xf32, #tpu.memory_space<vmem>>, vector<16x512xf32>
    tpu.vector_store %arg8[%c0_17, %c0_18], %19 {strides = array<i32>} : memref<16x512xf32, #tpu.memory_space<vmem>>, vector<16x512xf32>,
    %21 = vector.extract_strided_slice %19 {offsets = [0, 0], sizes = [1, 512], strides = [1, 1]} : vector<16x512xf32> to vector<1x512xf32>
    %cst_19 = arith.constant 0.000000e+00 : f32
    %22 = vector.broadcast %cst_19 : f32 to vector<1x512xf32>
    %23 = arith.maximumf %21, %22 : vector<1x512xf32>
    %24 = math.absf %21 : vector<1x512xf32>
    %cst_20 = arith.constant 0.000000e+00 : f32
    %25 = vector.broadcast %cst_20 : f32 to vector<1x512xf32>
    %26 = arith.subf %25, %24 : vector<1x512xf32>
    %27 = math.exp %26 : vector<1x512xf32>
    %28 = math.log1p %27 : vector<1x512xf32>
    %29 = arith.addf %23, %28 : vector<1x512xf32>
    %c0_21 = arith.constant 0 : index
    %c0_22 = arith.constant 0 : index
    %30 = vector.load %arg9[%c0_21, %c0_22] : memref<1x512xf32, #tpu.memory_space<vmem>>, vector<1x512xf32>
    tpu.vector_store %arg9[%c0_21, %c0_22], %29 {strides = array<i32>} : memref<1x512xf32, #tpu.memory_space<vmem>>, vector<1x512xf32>,
    return
  }
  func.func @transform_0(%arg0: i32) -> (i32, i32) {
    %c0_i32 = arith.constant 0 : i32
    %c0_i32_0 = arith.constant 0 : i32
    return %c0_i32, %arg0 : i32, i32
  }
  func.func @transform_1(%arg0: i32) -> (i32, i32) {
    %c0_i32 = arith.constant 0 : i32
    %c0_i32_0 = arith.constant 0 : i32
    %c0_i32_1 = arith.constant 0 : i32
    return %c0_i32, %c0_i32_0 : i32, i32
  }
  func.func @transform_2(%arg0: i32) -> (i32, i32) {
    %c0_i32 = arith.constant 0 : i32
    %c0_i32_0 = arith.constant 0 : i32
    %c0_i32_1 = arith.constant 0 : i32
    return %c0_i32, %c0_i32_0 : i32, i32
  }
  func.func @transform_3(%arg0: i32) -> (i32, i32) {
    %c0_i32 = arith.constant 0 : i32
    %c0_i32_0 = arith.constant 0 : i32
    %c0_i32_1 = arith.constant 0 : i32
    return %c0_i32, %c0_i32_0 : i32, i32
  }
  func.func @transform_4(%arg0: i32) -> (i32, i32) {
    %c0_i32 = arith.constant 0 : i32
    %c0_i32_0 = arith.constant 0 : i32
    %c0_i32_1 = arith.constant 0 : i32
    return %c0_i32, %c0_i32_0 : i32, i32
  }
  func.func @transform_5(%arg0: i32) -> (i32, i32) {
    %c0_i32 = arith.constant 0 : i32
    %c0_i32_0 = arith.constant 0 : i32
    %c0_i32_1 = arith.constant 0 : i32
    return %c0_i32, %c0_i32_0 : i32, i32
  }
  func.func @transform_6(%arg0: i32) -> (i32, i32) {
    %c0_i32 = arith.constant 0 : i32
    %c0_i32_0 = arith.constant 0 : i32
    %c0_i32_1 = arith.constant 0 : i32
    return %c0_i32, %c0_i32_0 : i32, i32
  }
  func.func @transform_7(%arg0: i32) -> (i32, i32) {
    %c0_i32 = arith.constant 0 : i32
    %c0_i32_0 = arith.constant 0 : i32
    return %c0_i32, %arg0 : i32, i32
  }
  func.func @transform_8(%arg0: i32) -> (i32, i32) {
    %c0_i32 = arith.constant 0 : i32
    %c0_i32_0 = arith.constant 0 : i32
    return %c0_i32, %arg0 : i32, i32
  }
}

</mosaic_0001>

<llo_original>
// kernel: _lambda_.1
$region0: #{_lambda_.1}
  #allocation0 [shape = 'u32[]', space=smem, size = 0x4, offset = 0x4, fixed_abs, tag = 'smem constant byte address 0x4 - core index']
  #allocation1 [shape = 'u32[144,128]{1,0:T(1,128)}', space=vmem, size = 0x12000, scoped, tag = 'internal scratch']
  %s0 = inlined_call_operand.vmem [shape: f32[10,1024], index: 0, kind: input, shape index: {}]
  %s1 = inlined_call_operand.vmem [shape: f32[32,10], index: 1, kind: input, shape index: {}]
  %s2 = inlined_call_operand.vmem [shape: f32[32,1], index: 2, kind: input, shape index: {}]
  %s3 = inlined_call_operand.vmem [shape: f32[32,32], index: 3, kind: input, shape index: {}]
  %s4 = inlined_call_operand.vmem [shape: f32[32,1], index: 4, kind: input, shape index: {}]
  %s5 = inlined_call_operand.vmem [shape: f32[16,32], index: 5, kind: input, shape index: {}]
  %s6 = inlined_call_operand.vmem [shape: f32[16,1], index: 6, kind: input, shape index: {}]
  %s7 = inlined_call_operand.vmem [shape: f32[16,1024], index: 7, kind: output, shape index: {0}]
  %s8 = inlined_call_operand.vmem [shape: f32[1,1024], index: 8, kind: output, shape index: {1}]
  %9 = xla_tuple %s7, %s8
  %s10 = sld [smem:[#allocation0]]
  $region111: #{_lambda_.1} parent=0
    _
  %s12 = ssub.s32 1, %s10
  %s13 = scalar_select 0, %s12, %s10
  $region1: #{_lambda_.1} parent=0
    #allocation2 [shape = 'u8[65536]{0}', space=vmem, size = 0x10000, scoped, tag = 'input window, operand 0']
    #allocation3 [shape = 'u8[65536]{0}', space=vmem, size = 0x10000, scoped, tag = 'output window, operand 0']
    loop: start=0, step=1, limit=4
    $region2: #{_lambda_.1} parent=1 // loop_pre_header
      _
    $region3: #{_lambda_.1} parent=1 // loop_header
      %s15 = sphi 0, %s19
      %p16 = scmp.ge.s32.totalorder %s15, 4
      %s25 = sphi 0, %s27
      %s28 = sphi 0, %s25
      %s29 = sphi 0, %s28
      %s45 = sphi 0, %s29
      %s49 = sphi 0, %s49
      %s51 = sphi 0, %s49
      %s52 = sphi 0, %s51
      %s66 = sphi 0, %s52
      %s70 = sphi 0, %s70
      %s72 = sphi 0, %s70
      %s73 = sphi 0, %s72
      %s87 = sphi 0, %s73
      %s91 = sphi 0, %s91
      %s93 = sphi 0, %s91
      %s94 = sphi 0, %s93
      %s108 = sphi 0, %s94
      %s112 = sphi 0, %s112
      %s114 = sphi 0, %s112
      %s115 = sphi 0, %s114
      %s129 = sphi 0, %s115
      %s133 = sphi 0, %s133
      %s135 = sphi 0, %s133
      %s136 = sphi 0, %s135
      %s150 = sphi 0, %s136
      %s154 = sphi 0, %s154
      %s156 = sphi 0, %s154
      %s157 = sphi 0, %s156
      %s171 = sphi 0, %s157
      %s177 = sphi 0, %s179
      %s180 = sphi 0, %s177
      %s181 = sphi 0, %s180
      %s197 = sphi 0, %s181
      %s203 = sphi 0, %s205
      %s206 = sphi 0, %s203
      %s207 = sphi 0, %s206
      %s223 = sphi 0, %s207
    $region4: #{_lambda_.1} parent=1 // loop_header_branch
      %18 = sbr.rel (%p16) target = $region8
    $region5: #{_lambda_.1} parent=1 // loop_body
      %s20 = ssub.s32 %s15, 1
      %s21 = ssub.s32 %s15, 2
      %s22 = sadd.s32 %s15, 1
      %s23 = ssub.s32 %s15, %s22
      %p24 = scmp.eq.s32.totalorder %s23, 0
      %s26 = sadd.s32 %s25, 1
      %s27 = scalar_select %p24, %s25, %s26
      %p30 = pneg %p24
      %p31 = scmp.eq.s32.totalorder %s15, 1
      %p32 = por %p30, %p31
      %p33 = scmp.ne.s32.totalorder %s25, %s28
      %p34 = scmp.eq.s32.totalorder %s15, 0
      %p35 = por %p33, %p34
      %p36 = scmp.ne.s32.totalorder %s25, %s28
      %p37 = scmp.eq.s32.totalorder %s20, 1
      %p38 = por %p36, %p37
      %p39 = scmp.ne.s32.totalorder %s28, %s29
      %p40 = scmp.eq.s32.totalorder %s20, 0
      %p41 = por %p39, %p40
      %p42 = scmp.ne.s32.totalorder %s28, %s29
      %p43 = scmp.eq.s32.totalorder %s21, 1
      %p44 = por %p42, %p43
      %p46 = scmp.ne.s32.totalorder %s29, %s45
      %p47 = scmp.eq.s32.totalorder %s21, 0
      %p48 = por %p46, %p47
      %s50 = sadd.s32 %s49, 1
      %p53 = scmp.eq.s32.totalorder %s15, 1
      %p54 = scmp.ne.s32.totalorder %s49, %s51
      %p55 = scmp.eq.s32.totalorder %s15, 0
      %p56 = por %p54, %p55
      %p57 = scmp.ne.s32.totalorder %s49, %s51
      %p58 = scmp.eq.s32.totalorder %s20, 1
      %p59 = por %p57, %p58
      %p60 = scmp.ne.s32.totalorder %s51, %s52
      %p61 = scmp.eq.s32.totalorder %s20, 0
      %p62 = por %p60, %p61
      %p63 = scmp.ne.s32.totalorder %s51, %s52
      %p64 = scmp.eq.s32.totalorder %s21, 1
      %p65 = por %p63, %p64
      %p67 = scmp.ne.s32.totalorder %s52, %s66
      %p68 = scmp.eq.s32.totalorder %s21, 0
      %p69 = por %p67, %p68
      %s71 = sadd.s32 %s70, 1
      %p74 = scmp.eq.s32.totalorder %s15, 1
      %p75 = scmp.ne.s32.totalorder %s70, %s72
      %p76 = scmp.eq.s32.totalorder %s15, 0
      %p77 = por %p75, %p76
      %p78 = scmp.ne.s32.totalorder %s70, %s72
      %p79 = scmp.eq.s32.totalorder %s20, 1
      %p80 = por %p78, %p79
      %p81 = scmp.ne.s32.totalorder %s72, %s73
      %p82 = scmp.eq.s32.totalorder %s20, 0
      %p83 = por %p81, %p82
      %p84 = scmp.ne.s32.totalorder %s72, %s73
      %p85 = scmp.eq.s32.totalorder %s21, 1
      %p86 = por %p84, %p85
      %p88 = scmp.ne.s32.totalorder %s73, %s87
      %p89 = scmp.eq.s32.totalorder %s21, 0
      %p90 = por %p88, %p89
      %s92 = sadd.s32 %s91, 1
      %p95 = scmp.eq.s32.totalorder %s15, 1
      %p96 = scmp.ne.s32.totalorder %s91, %s93
      %p97 = scmp.eq.s32.totalorder %s15, 0
      %p98 = por %p96, %p97
      %p99 = scmp.ne.s32.totalorder %s91, %s93
      %p100 = scmp.eq.s32.totalorder %s20, 1
      %p101 = por %p99, %p100
      %p102 = scmp.ne.s32.totalorder %s93, %s94
      %p103 = scmp.eq.s32.totalorder %s20, 0
      %p104 = por %p102, %p103
      %p105 = scmp.ne.s32.totalorder %s93, %s94
      %p106 = scmp.eq.s32.totalorder %s21, 1
      %p107 = por %p105, %p106
      %p109 = scmp.ne.s32.totalorder %s94, %s108
      %p110 = scmp.eq.s32.totalorder %s21, 0
      %p111 = por %p109, %p110
      %s113 = sadd.s32 %s112, 1
      %p116 = scmp.eq.s32.totalorder %s15, 1
      %p117 = scmp.ne.s32.totalorder %s112, %s114
      %p118 = scmp.eq.s32.totalorder %s15, 0
      %p119 = por %p117, %p118
      %p120 = scmp.ne.s32.totalorder %s112, %s114
      %p121 = scmp.eq.s32.totalorder %s20, 1
      %p122 = por %p120, %p121
      %p123 = scmp.ne.s32.totalorder %s114, %s115
      %p124 = scmp.eq.s32.totalorder %s20, 0
      %p125 = por %p123, %p124
      %p126 = scmp.ne.s32.totalorder %s114, %s115
      %p127 = scmp.eq.s32.totalorder %s21, 1
      %p128 = por %p126, %p127
      %p130 = scmp.ne.s32.totalorder %s115, %s129
      %p131 = scmp.eq.s32.totalorder %s21, 0
      %p132 = por %p130, %p131
      %s134 = sadd.s32 %s133, 1
      %p137 = scmp.eq.s32.totalorder %s15, 1
      %p138 = scmp.ne.s32.totalorder %s133, %s135
      %p139 = scmp.eq.s32.totalorder %s15, 0
      %p140 = por %p138, %p139
      %p141 = scmp.ne.s32.totalorder %s133, %s135
      %p142 = scmp.eq.s32.totalorder %s20, 1
      %p143 = por %p141, %p142
      %p144 = scmp.ne.s32.totalorder %s135, %s136
      %p145 = scmp.eq.s32.totalorder %s20, 0
      %p146 = por %p144, %p145
      %p147 = scmp.ne.s32.totalorder %s135, %s136
      %p148 = scmp.eq.s32.totalorder %s21, 1
      %p149 = por %p147, %p148
      %p151 = scmp.ne.s32.totalorder %s136, %s150
      %p152 = scmp.eq.s32.totalorder %s21, 0
      %p153 = por %p151, %p152
      %s155 = sadd.s32 %s154, 1
      %p158 = scmp.eq.s32.totalorder %s15, 1
      %p159 = scmp.ne.s32.totalorder %s154, %s156
      %p160 = scmp.eq.s32.totalorder %s15, 0
      %p161 = por %p159, %p160
      %p162 = scmp.ne.s32.totalorder %s154, %s156
      %p163 = scmp.eq.s32.totalorder %s20, 1
      %p164 = por %p162, %p163
      %p165 = scmp.ne.s32.totalorder %s156, %s157
      %p166 = scmp.eq.s32.totalorder %s20, 0
      %p167 = por %p165, %p166
      %p168 = scmp.ne.s32.totalorder %s156, %s157
      %p169 = scmp.eq.s32.totalorder %s21, 1
      %p170 = por %p168, %p169
      %p172 = scmp.ne.s32.totalorder %s157, %s171
      %p173 = scmp.eq.s32.totalorder %s21, 0
      %p174 = por %p172, %p173
      %s175 = ssub.s32 %s15, %s22
      %p176 = scmp.eq.s32.totalorder %s175, 0
      %s178 = sadd.s32 %s177, 1
      %s179 = scalar_select %p176, %s177, %s178
      %p182 = pneg %p176
      %p183 = scmp.eq.s32.totalorder %s15, 1
      %p184 = por %p182, %p183
      %p185 = scmp.ne.s32.totalorder %s177, %s180
      %p186 = scmp.eq.s32.totalorder %s15, 0
      %p187 = por %p185, %p186
      %p188 = scmp.ne.s32.totalorder %s177, %s180
      %p189 = scmp.eq.s32.totalorder %s20, 1
      %p190 = por %p188, %p189
      %p191 = scmp.ne.s32.totalorder %s180, %s181
      %p192 = scmp.eq.s32.totalorder %s20, 0
      %p193 = por %p191, %p192
      %p194 = scmp.ne.s32.totalorder %s180, %s181
      %p195 = scmp.eq.s32.totalorder %s21, 1
      %p196 = por %p194, %p195
      %p198 = scmp.ne.s32.totalorder %s181, %s197
      %p199 = scmp.eq.s32.totalorder %s21, 0
      %p200 = por %p198, %p199
      %s201 = ssub.s32 %s15, %s22
      %p202 = scmp.eq.s32.totalorder %s201, 0
      %s204 = sadd.s32 %s203, 1
      %s205 = scalar_select %p202, %s203, %s204
      %p208 = pneg %p202
      %p209 = scmp.eq.s32.totalorder %s15, 1
      %p210 = por %p208, %p209
      %p211 = scmp.ne.s32.totalorder %s203, %s206
      %p212 = scmp.eq.s32.totalorder %s15, 0
      %p213 = por %p211, %p212
      %p214 = scmp.ne.s32.totalorder %s203, %s206
      %p215 = scmp.eq.s32.totalorder %s20, 1
      %p216 = por %p214, %p215
      %p217 = scmp.ne.s32.totalorder %s206, %s207
      %p218 = scmp.eq.s32.totalorder %s20, 0
      %p219 = por %p217, %p218
      %p220 = scmp.ne.s32.totalorder %s206, %s207
      %p221 = scmp.eq.s32.totalorder %s21, 1
      %p222 = por %p220, %p221
      %p224 = scmp.ne.s32.totalorder %s207, %s223
      %p225 = scmp.eq.s32.totalorder %s21, 0
      %p226 = por %p224, %p225
      %p227 = scmp.le.s32.totalorder 1, %s15
      %p228 = scmp.lt.s32.totalorder %s15, 3
      %p229 = pnand %p227, %p228
      %p230 = pneg %p229
      // Predicated region
      $region9: #{_lambda_.1} parent=5 // pred_check
        _
      $region10: #{_lambda_.1} parent=5 // pred_check_branch
        %232 = sbr.rel (%p229) target = $region12
      $region11: #{_lambda_.1} parent=5 // pred_region
        %s233 = ssub.s32 %s15, 1
        // Predicated region
        $region13: #{_lambda_.1} parent=11 // pred_check
          %p234 = pneg %p62
        $region14: #{_lambda_.1} parent=11 // pred_check_branch
          %236 = sbr.rel (%p234) target = $region16
        $region15: #{_lambda_.1} parent=11 // pred_region
          _
        $region16: #{_lambda_.1} parent=11 // pred_fallthru
          _
        // Predicated region
        $region17: #{_lambda_.1} parent=11 // pred_check
          %p237 = pneg %p83
        $region18: #{_lambda_.1} parent=11 // pred_check_branch
          %239 = sbr.rel (%p237) target = $region20
        $region19: #{_lambda_.1} parent=11 // pred_region
          _
        $region20: #{_lambda_.1} parent=11 // pred_fallthru
          _
        // Predicated region
        $region21: #{_lambda_.1} parent=11 // pred_check
          %p240 = pneg %p104
        $region22: #{_lambda_.1} parent=11 // pred_check_branch
          %242 = sbr.rel (%p240) target = $region24
        $region23: #{_lambda_.1} parent=11 // pred_region
          _
        $region24: #{_lambda_.1} parent=11 // pred_fallthru
          _
        // Predicated region
        $region25: #{_lambda_.1} parent=11 // pred_check
          %p243 = pneg %p125
        $region26: #{_lambda_.1} parent=11 // pred_check_branch
          %245 = sbr.rel (%p243) target = $region28
        $region27: #{_lambda_.1} parent=11 // pred_region
          _
        $region28: #{_lambda_.1} parent=11 // pred_fallthru
          _
        // Predicated region
        $region29: #{_lambda_.1} parent=11 // pred_check
          %p246 = pneg %p146
        $region30: #{_lambda_.1} parent=11 // pred_check_branch
          %248 = sbr.rel (%p246) target = $region32
        $region31: #{_lambda_.1} parent=11 // pred_region
          _
        $region32: #{_lambda_.1} parent=11 // pred_fallthru
          _
        // Predicated region
        $region33: #{_lambda_.1} parent=11 // pred_check
          %p249 = pneg %p167
        $region34: #{_lambda_.1} parent=11 // pred_check_branch
          %251 = sbr.rel (%p249) target = $region36
        $region35: #{_lambda_.1} parent=11 // pred_region
          _
        $region36: #{_lambda_.1} parent=11 // pred_fallthru
          _
      $region12: #{_lambda_.1} parent=5 // pred_fallthru
        _
      %p252 = scmp.lt.s32.totalorder %s15, 2
      // Predicated region
      $region37: #{_lambda_.1} parent=5 // pred_check
        %p253 = pneg %p252
      $region38: #{_lambda_.1} parent=5 // pred_check_branch
        %255 = sbr.rel (%p253) target = $region40
      $region39: #{_lambda_.1} parent=5 // pred_region
        // Predicated region
        $region41: #{_lambda_.1} parent=39 // pred_check
          %p256 = pneg %p35
        $region42: #{_lambda_.1} parent=39 // pred_check_branch
          %258 = sbr.rel (%p256) target = $region44
        $region43: #{_lambda_.1} parent=39 // pred_region
          %s259 = sand.u32 %s25, 1
          %s260 = sand.u32 %s25, 1
          %s261 = smul.addr %s260, 64
          %s262 = scalar_lea.vmem [#allocation2], %s261
          %s263 = smul.u32 4, %s15
          %s264 = smul.addr %s263, 8
          %s265 = scalar_lea.vmem %s0, %s264
          // Predicated region
          $region45: #{_lambda_.1} parent=43 // pred_check
            _
          $region46: #{_lambda_.1} parent=43 // pred_check_branch
            %267 = sbr.rel (0) target = $region48
          $region47: #{_lambda_.1} parent=43 // pred_region
            // Predicated region
            $region49: #{_lambda_.1} parent=47 // pred_check
              _
            $region50: #{_lambda_.1} parent=47 // pred_check_branch
              %269 = sbr.rel (0) target = $region52
            $region51: #{_lambda_.1} parent=47 // pred_region
              loop: start=0, step=1, limit=1
              $region53: #{_lambda_.1} parent=51 // loop_pre_header
                _
              $region54: #{_lambda_.1} parent=51 // loop_header
                %s271 = sphi 0, %s275
                %p272 = scmp.ge.s32.totalorder %s271, 1
                %s276 = sphi %s265, %s265
                %s277 = sphi %s262, %s262
              $region55: #{_lambda_.1} parent=51 // loop_header_branch
                %274 = sbr.rel (%p272) target = $region59
              $region56: #{_lambda_.1} parent=51 // loop_body
                %v278 = vld [vmem:[%s276] sm:$0xff]
                %279 = vst [vmem:[%s277] sm:$0xff] %v278
                %v280 = vld [vmem:[%s276 + $0x8] sm:$0xff]
                %281 = vst [vmem:[%s277 + $0x8] sm:$0xff] %v280
                %v282 = vld [vmem:[%s276 + $0x10] sm:$0xff]
                %283 = vst [vmem:[%s277 + $0x10] sm:$0xff] %v282
                %v284 = vld [vmem:[%s276 + $0x18] sm:$0xff]
                %285 = vst [vmem:[%s277 + $0x18] sm:$0xff] %v284
                %v286 = vld [vmem:[%s276 + $0x40] sm:$0xff]
                %287 = vst [vmem:[%s277 + $0x20] sm:$0xff] %v286
                %v288 = vld [vmem:[%s276 + $0x48] sm:$0xff]
                %289 = vst [vmem:[%s277 + $0x28] sm:$0xff] %v288
                %v290 = vld [vmem:[%s276 + $0x50] sm:$0xff]
                %291 = vst [vmem:[%s277 + $0x30] sm:$0xff] %v290
                %v292 = vld [vmem:[%s276 + $0x58] sm:$0xff]
                %293 = vst [vmem:[%s277 + $0x38] sm:$0xff] %v292
              $region57: #{_lambda_.1} parent=51 // loop_footer
                %s275 = sadd.s32 1, %s271
              $region58: #{_lambda_.1} parent=51 // loop_footer_branch
                %270 = sbr.rel target = $region54
              $region59: #{_lambda_.1} parent=51 // loop_exit
                _
            $region52: #{_lambda_.1} parent=47 // pred_fallthru
              _
            // Predicated region
            $region60: #{_lambda_.1} parent=47 // pred_check
              _
            $region61: #{_lambda_.1} parent=47 // pred_check_branch
              %295 = sbr.rel target = $region63
            $region62: #{_lambda_.1} parent=47 // pred_region
              _
            $region63: #{_lambda_.1} parent=47 // pred_fallthru
              _
          $region48: #{_lambda_.1} parent=43 // pred_fallthru
            _
          %296 = vnop
        $region44: #{_lambda_.1} parent=39 // pred_fallthru
          _
      $region40: #{_lambda_.1} parent=5 // pred_fallthru
        _
      %p297 = scmp.le.s32.totalorder 1, %s15
      %p298 = scmp.lt.s32.totalorder %s15, 3
      %p299 = pnand %p297, %p298
      %p300 = pneg %p299
      // Predicated region
      $region64: #{_lambda_.1} parent=5 // pred_check
        _
      $region65: #{_lambda_.1} parent=5 // pred_check_branch
        %302 = sbr.rel (%p299) target = $region67
      $region66: #{_lambda_.1} parent=5 // pred_region
        %s303 = ssub.s32 %s15, 1
        %s304 = sand.u32 %s28, 1
        %s305 = sand.u32 %s28, 1
        %s306 = smul.addr %s305, 64
        %s307 = scalar_lea.vmem [#allocation2], %s306
        // Predicated region
        $region68: #{_lambda_.1} parent=66 // pred_check
          %p308 = pneg %p41
        $region69: #{_lambda_.1} parent=66 // pred_check_branch
          %310 = sbr.rel (%p308) target = $region71
        $region70: #{_lambda_.1} parent=66 // pred_region
          _
        $region71: #{_lambda_.1} parent=66 // pred_fallthru
          _
        %s311 = sand.u32 %s28, 1
        %s312 = sand.u32 %s28, 1
        %s313 = smul.addr %s312, 64
        %s314 = scalar_lea.vmem [#allocation2], %s313
        %p315 = pneg %p41
        %p316 = pneg %p38
        %p317 = pneg %p62
        %p318 = pneg %p59
        %p319 = pneg %p83
        %p320 = pneg %p80
        %p321 = pneg %p104
        %p322 = pneg %p101
        %p323 = pneg %p125
        %p324 = pneg %p122
        %p325 = pneg %p146
        %p326 = pneg %p143
        %p327 = pneg %p167
        %p328 = pneg %p164
        %p329 = pneg %p193
        %p330 = pneg %p190
        %s331 = sand.u32 %s180, 1
        %s332 = sand.u32 %s180, 1
        %s333 = smul.addr %s332, 64
        %s334 = scalar_lea.vmem [#allocation3], %s333
        %p335 = pneg %p219
        %p336 = pneg %p216
        %s337 = smul.u32 4, %s20
        %p338 = scmp.lt.s32.totalorder %s337, 7
        %s339 = scalar_select %p338, %s337, 7
        %s340 = scalar_lea.vmem %s8, %s339
        %s341 = smul.u32 4, %s20
        %s342 = smul.u32 4, %s20
        %s343 = smul.u32 4, %s20
        %p344 = scmp.lt.s32.totalorder %s343, 7
        %s345 = scalar_select %p344, %s343, 7
        %s346 = scalar_lea.vmem %s8, %s345
        %s347 = smul.u32 4, %s20
        %v348 = vld [vmem:[%s307] sm:$0xff]
        %v349 = vld [vmem:[%s307 + $0x8] sm:$0xff]
        %v350 = vld [vmem:[%s307 + $0x10] sm:$0xff]
        %v351 = vld [vmem:[%s307 + $0x18] sm:$0xff]
        %v352 = vld [vmem:[%s307 + $0x20] sm:$0x3]
        %v353 = vld [vmem:[%s307 + $0x28] sm:$0x3]
        %v354 = vld [vmem:[%s307 + $0x30] sm:$0x3]
        %v355 = vld [vmem:[%s307 + $0x38] sm:$0x3]
        %v356 = vld [vmem:[%s1] sm:$0xff]
        %v357 = vld [vmem:[%s1 + $0x8] sm:$0xff]
        %v358 = vld [vmem:[%s1 + $0x10] sm:$0xff]
        %v359 = vld [vmem:[%s1 + $0x18] sm:$0xff]
        %v360 = vld [vmem:[%s2] sm:$0xff]
        %v361 = vld [vmem:[%s2 + $0x8] sm:$0xff]
        %v362 = vld [vmem:[%s2 + $0x10] sm:$0xff]
        %v363 = vld [vmem:[%s2 + $0x18] sm:$0xff]
        %v364 = vld [vmem:[%s3] sm:$0xff]
        %v365 = vld [vmem:[%s3 + $0x8] sm:$0xff]
        %v366 = vld [vmem:[%s3 + $0x10] sm:$0xff]
        %v367 = vld [vmem:[%s3 + $0x18] sm:$0xff]
        %v368 = vld [vmem:[%s4] sm:$0xff]
        %v369 = vld [vmem:[%s4 + $0x8] sm:$0xff]
        %v370 = vld [vmem:[%s4 + $0x10] sm:$0xff]
        %v371 = vld [vmem:[%s4 + $0x18] sm:$0xff]
        %v372 = vld [vmem:[%s5] sm:$0xff]
        %v373 = vld [vmem:[%s5 + $0x8] sm:$0xff]
        %v374 = vld [vmem:[%s6] sm:$0xff]
        %v375 = vld [vmem:[%s6 + $0x8] sm:$0xff]
        %377 = vset.pattern.permute.xlu0 0
        %378 = vperm.xlu0 %377, %v360
        %v379 = vpop.permute.xlu0 %378
        %382 = vset.pattern.permute.xlu0 0
        %383 = vperm.xlu0 %382, %v361
        %v384 = vpop.permute.xlu0 %383
        %387 = vset.pattern.permute.xlu0 0
        %388 = vperm.xlu0 %387, %v362
        %v389 = vpop.permute.xlu0 %388
        %392 = vset.pattern.permute.xlu0 0
        %393 = vperm.xlu0 %392, %v363
        %v394 = vpop.permute.xlu0 %393
        %vm396 = vcmask 80896
        %v398 = vsel %vm396, %v356, 0
        %v401 = vsel %vm396, %v357, 0
        %v404 = vsel %vm396, %v358, 0
        %v407 = vsel %vm396, %v359, 0
        %vm409 = vcmask 1041408
        %v411 = vsel %vm409, %v352, 0
        %v414 = vsel %vm409, %v353, 0
        %v417 = vsel %vm409, %v354, 0
        %v420 = vsel %vm409, %v355, 0
        %422 = vmatprep.subr.mxu0 0.0
        %423 = vmatpush1.msra.mxu0 0.0
        %424 = vmatprep.subr.mxu0 0.0
        %425 = vmatpush1.msra.mxu0 0.0
        %426 = vmatprep.subr.mxu0 0.0
        %427 = vmatpush1.msra.mxu0 0.0
        %428 = vmatprep.subr.mxu0 0.0
        %429 = vmatpush1.msra.mxu0 0.0
        %430 = vmatprep.subr.mxu0 0.0
        %431 = vmatpush1.msra.mxu0 0.0
        %432 = vmatprep.subr.mxu0 0.0
        %433 = vmatpush1.msra.mxu0 0.0
        %434 = vmatprep.subr.mxu0 0.0
        %435 = vmatpush1.msra.mxu0 0.0
        %436 = vmatprep.subr.mxu0 0.0
        %437 = vmatpush1.msra.mxu0 0.0
        %438 = vmatprep.subr.mxu0 0.0
        %439 = vmatpush1.msra.mxu0 0.0
        %440 = vmatprep.subr.mxu0 0.0
        %441 = vmatpush1.msra.mxu0 0.0
        %442 = vmatprep.subr.mxu0 0.0
        %443 = vmatpush1.msra.mxu0 0.0
        %444 = vmatprep.subr.mxu0 0.0
        %445 = vmatpush1.msra.mxu0 0.0
        %446 = vmatprep.subr.mxu0 0.0
        %447 = vmatpush1.msra.mxu0 0.0
        %448 = vmatprep.subr.mxu0 0.0
        %449 = vmatpush1.msra.mxu0 0.0
        %450 = vmatprep.subr.mxu0 %v414
        %451 = vmatpush1.msra.mxu0 %v411
        %452 = vmatprep.subr.mxu0 %v349
        %453 = vmatpush1.msra.mxu0 %v348
        %454 = vmatprep.subr.mxu0 0.0
        %455 = vmatpush2.msra.mxu0 0.0
        %456 = vmatprep.subr.mxu0 0.0
        %457 = vmatpush2.msra.mxu0 0.0
        %458 = vmatprep.subr.mxu0 0.0
        %459 = vmatpush2.msra.mxu0 0.0
        %460 = vmatprep.subr.mxu0 0.0
        %461 = vmatpush2.msra.mxu0 0.0
        %462 = vmatprep.subr.mxu0 0.0
        %463 = vmatpush2.msra.mxu0 0.0
        %464 = vmatprep.subr.mxu0 0.0
        %465 = vmatpush2.msra.mxu0 0.0
        %466 = vmatprep.subr.mxu0 0.0
        %467 = vmatpush2.msra.mxu0 0.0
        %468 = vmatprep.subr.mxu0 0.0
        %469 = vmatpush2.msra.mxu0 0.0
        %470 = vmatprep.subr.mxu0 0.0
        %471 = vmatpush2.msra.mxu0 0.0
        %472 = vmatprep.subr.mxu0 0.0
        %473 = vmatpush2.msra.mxu0 0.0
        %474 = vmatprep.subr.mxu0 0.0
        %475 = vmatpush2.msra.mxu0 0.0
        %476 = vmatprep.subr.mxu0 0.0
        %477 = vmatpush2.msra.mxu0 0.0
        %478 = vmatprep.subr.mxu0 0.0
        %479 = vmatpush2.msra.mxu0 0.0
        %480 = vmatprep.subr.mxu0 0.0
        %481 = vmatpush2.msra.mxu0 0.0
        %482 = vmatprep.subr.mxu0 0.0
        %483 = vmatpush2.msra.mxu0 0.0
        %484 = vmatprep.subr.mxu0 0.0
        %485 = vmatpush2.msra.mxu0 0.0
        %486 = vmatprep.mubr.f32.mxu0 0.0
        %487 = vmatmul.mubr.f32.gmra.mxu0 %v398
        %v488 = vpop.f32.mrf.mxu0
        %v489 = vadd.f32 %v379, %v488
        %v490 = vpop.f32.mrf.mxu0
        %v491 = vadd.f32 %v379, %v490
        %492 = vmatprep.mubr.f32.mxu0 0.0
        %493 = vmatmul.mubr.f32.gmra.mxu0 %v401
        %v494 = vpop.f32.mrf.mxu0
        %v495 = vadd.f32 %v384, %v494
        %v496 = vpop.f32.mrf.mxu0
        %v497 = vadd.f32 %v384, %v496
        %498 = vmatprep.mubr.f32.mxu0 0.0
        %499 = vmatmul.mubr.f32.gmra.mxu0 %v404
        %v500 = vpop.f32.mrf.mxu0
        %v501 = vadd.f32 %v389, %v500
        %v502 = vpop.f32.mrf.mxu0
        %v503 = vadd.f32 %v389, %v502
        %504 = vmatprep.mubr.f32.mxu0 0.0
        %505 = vmatmul.mubr.f32.gmra.mxu0 %v407
        %v506 = vpop.f32.mrf.mxu0
        %v507 = vadd.f32 %v394, %v506
        %v508 = vpop.f32.mrf.mxu0
        %v509 = vadd.f32 %v394, %v508
        %510 = vdwg.mxu0
        %511 = vmatprep.subr.mxu0 0.0
        %512 = vmatpush1.msra.mxu0 0.0
        %513 = vmatprep.subr.mxu0 0.0
        %514 = vmatpush1.msra.mxu0 0.0
        %515 = vmatprep.subr.mxu0 0.0
        %516 = vmatpush1.msra.mxu0 0.0
        %517 = vmatprep.subr.mxu0 0.0
        %518 = vmatpush1.msra.mxu0 0.0
        %519 = vmatprep.subr.mxu0 0.0
        %520 = vmatpush1.msra.mxu0 0.0
        %521 = vmatprep.subr.mxu0 0.0
        %522 = vmatpush1.msra.mxu0 0.0
        %523 = vmatprep.subr.mxu0 0.0
        %524 = vmatpush1.msra.mxu0 0.0
        %525 = vmatprep.subr.mxu0 0.0
        %526 = vmatpush1.msra.mxu0 0.0
        %527 = vmatprep.subr.mxu0 0.0
        %528 = vmatpush1.msra.mxu0 0.0
        %529 = vmatprep.subr.mxu0 0.0
        %530 = vmatpush1.msra.mxu0 0.0
        %531 = vmatprep.subr.mxu0 0.0
        %532 = vmatpush1.msra.mxu0 0.0
        %533 = vmatprep.subr.mxu0 0.0
        %534 = vmatpush1.msra.mxu0 0.0
        %535 = vmatprep.subr.mxu0 0.0
        %536 = vmatpush1.msra.mxu0 0.0
        %537 = vmatprep.subr.mxu0 0.0
        %538 = vmatpush1.msra.mxu0 0.0
        %539 = vmatprep.subr.mxu0 %v420
        %540 = vmatpush1.msra.mxu0 %v417
        %541 = vmatprep.subr.mxu0 %v351
        %542 = vmatpush1.msra.mxu0 %v350
        %543 = vmatprep.subr.mxu0 0.0
        %544 = vmatpush2.msra.mxu0 0.0
        %545 = vmatprep.subr.mxu0 0.0
        %546 = vmatpush2.msra.mxu0 0.0
        %547 = vmatprep.subr.mxu0 0.0
        %548 = vmatpush2.msra.mxu0 0.0
        %549 = vmatprep.subr.mxu0 0.0
        %550 = vmatpush2.msra.mxu0 0.0
        %551 = vmatprep.subr.mxu0 0.0
        %552 = vmatpush2.msra.mxu0 0.0
        %553 = vmatprep.subr.mxu0 0.0
        %554 = vmatpush2.msra.mxu0 0.0
        %555 = vmatprep.subr.mxu0 0.0
        %556 = vmatpush2.msra.mxu0 0.0
        %557 = vmatprep.subr.mxu0 0.0
        %558 = vmatpush2.msra.mxu0 0.0
        %559 = vmatprep.subr.mxu0 0.0
        %560 = vmatpush2.msra.mxu0 0.0
        %561 = vmatprep.subr.mxu0 0.0
        %562 = vmatpush2.msra.mxu0 0.0
        %563 = vmatprep.subr.mxu0 0.0
        %564 = vmatpush2.msra.mxu0 0.0
        %565 = vmatprep.subr.mxu0 0.0
        %566 = vmatpush2.msra.mxu0 0.0
        %567 = vmatprep.subr.mxu0 0.0
        %568 = vmatpush2.msra.mxu0 0.0
        %569 = vmatprep.subr.mxu0 0.0
        %570 = vmatpush2.msra.mxu0 0.0
        %571 = vmatprep.subr.mxu0 0.0
        %572 = vmatpush2.msra.mxu0 0.0
        %573 = vmatprep.subr.mxu0 0.0
        %574 = vmatpush2.msra.mxu0 0.0
        %575 = vmatprep.mubr.f32.mxu0 0.0
        %576 = vmatmul.mubr.f32.gmra.mxu0 %v398
        %v577 = vpop.f32.mrf.mxu0
        %v578 = vadd.f32 %v379, %v577
        %v579 = vpop.f32.mrf.mxu0
        %v580 = vadd.f32 %v379, %v579
        %581 = vmatprep.mubr.f32.mxu0 0.0
        %582 = vmatmul.mubr.f32.gmra.mxu0 %v401
        %v583 = vpop.f32.mrf.mxu0
        %v584 = vadd.f32 %v384, %v583
        %v585 = vpop.f32.mrf.mxu0
        %v586 = vadd.f32 %v384, %v585
        %587 = vmatprep.mubr.f32.mxu0 0.0
        %588 = vmatmul.mubr.f32.gmra.mxu0 %v404
        %v589 = vpop.f32.mrf.mxu0
        %v590 = vadd.f32 %v389, %v589
        %v591 = vpop.f32.mrf.mxu0
        %v592 = vadd.f32 %v389, %v591
        %593 = vmatprep.mubr.f32.mxu0 0.0
        %594 = vmatmul.mubr.f32.gmra.mxu0 %v407
        %v595 = vpop.f32.mrf.mxu0
        %v596 = vadd.f32 %v394, %v595
        %v597 = vpop.f32.mrf.mxu0
        %v598 = vadd.f32 %v394, %v597
        %599 = vdwg.mxu0
        %v600 = vmax.f32 %v489, 0.0
        %v601 = vmax.f32 %v491, 0.0
        %v602 = vmax.f32 %v578, 0.0
        %v603 = vmax.f32 %v580, 0.0
        %v604 = vmax.f32 %v495, 0.0
        %v605 = vmax.f32 %v497, 0.0
        %v606 = vmax.f32 %v584, 0.0
        %v607 = vmax.f32 %v586, 0.0
        %v608 = vmax.f32 %v501, 0.0
        %v609 = vmax.f32 %v503, 0.0
        %v610 = vmax.f32 %v590, 0.0
        %v611 = vmax.f32 %v592, 0.0
        %v612 = vmax.f32 %v507, 0.0
        %v613 = vmax.f32 %v509, 0.0
        %v614 = vmax.f32 %v596, 0.0
        %v615 = vmax.f32 %v598, 0.0
        %617 = vset.pattern.permute.xlu0 0
        %618 = vperm.xlu0 %617, %v368
        %v619 = vpop.permute.xlu0 %618
        %622 = vset.pattern.permute.xlu0 0
        %623 = vperm.xlu0 %622, %v369
        %v624 = vpop.permute.xlu0 %623
        %627 = vset.pattern.permute.xlu0 0
        %628 = vperm.xlu0 %627, %v370
        %v629 = vpop.permute.xlu0 %628
        %632 = vset.pattern.permute.xlu0 0
        %633 = vperm.xlu0 %632, %v371
        %v634 = vpop.permute.xlu0 %633
        %vm636 = vcmask 261120
        %v638 = vsel %vm636, %v364, 0
        %v641 = vsel %vm636, %v365, 0
        %v644 = vsel %vm636, %v366, 0
        %v647 = vsel %vm636, %v367, 0
        %649 = vmatprep.subr.mxu0 0.0
        %650 = vmatpush1.msra.mxu0 0.0
        %651 = vmatprep.subr.mxu0 0.0
        %652 = vmatpush1.msra.mxu0 0.0
        %653 = vmatprep.subr.mxu0 0.0
        %654 = vmatpush1.msra.mxu0 0.0
        %655 = vmatprep.subr.mxu0 0.0
        %656 = vmatpush1.msra.mxu0 0.0
        %657 = vmatprep.subr.mxu0 0.0
        %658 = vmatpush1.msra.mxu0 0.0
        %659 = vmatprep.subr.mxu0 0.0
        %660 = vmatpush1.msra.mxu0 0.0
        %661 = vmatprep.subr.mxu0 0.0
        %662 = vmatpush1.msra.mxu0 0.0
        %663 = vmatprep.subr.mxu0 0.0
        %664 = vmatpush1.msra.mxu0 0.0
        %665 = vmatprep.subr.mxu0 0.0
        %666 = vmatpush1.msra.mxu0 0.0
        %667 = vmatprep.subr.mxu0 0.0
        %668 = vmatpush1.msra.mxu0 0.0
        %669 = vmatprep.subr.mxu0 0.0
        %670 = vmatpush1.msra.mxu0 0.0
        %671 = vmatprep.subr.mxu0 0.0
        %672 = vmatpush1.msra.mxu0 0.0
        %673 = vmatprep.subr.mxu0 %v613
        %674 = vmatpush1.msra.mxu0 %v612
        %675 = vmatprep.subr.mxu0 %v609
        %676 = vmatpush1.msra.mxu0 %v608
        %677 = vmatprep.subr.mxu0 %v605
        %678 = vmatpush1.msra.mxu0 %v604
        %679 = vmatprep.subr.mxu0 %v601
        %680 = vmatpush1.msra.mxu0 %v600
        %681 = vmatprep.subr.mxu0 0.0
        %682 = vmatpush2.msra.mxu0 0.0
        %683 = vmatprep.subr.mxu0 0.0
        %684 = vmatpush2.msra.mxu0 0.0
        %685 = vmatprep.subr.mxu0 0.0
        %686 = vmatpush2.msra.mxu0 0.0
        %687 = vmatprep.subr.mxu0 0.0
        %688 = vmatpush2.msra.mxu0 0.0
        %689 = vmatprep.subr.mxu0 0.0
        %690 = vmatpush2.msra.mxu0 0.0
        %691 = vmatprep.subr.mxu0 0.0
        %692 = vmatpush2.msra.mxu0 0.0
        %693 = vmatprep.subr.mxu0 0.0
        %694 = vmatpush2.msra.mxu0 0.0
        %695 = vmatprep.subr.mxu0 0.0
        %696 = vmatpush2.msra.mxu0 0.0
        %697 = vmatprep.subr.mxu0 0.0
        %698 = vmatpush2.msra.mxu0 0.0
        %699 = vmatprep.subr.mxu0 0.0
        %700 = vmatpush2.msra.mxu0 0.0
        %701 = vmatprep.subr.mxu0 0.0
        %702 = vmatpush2.msra.mxu0 0.0
        %703 = vmatprep.subr.mxu0 0.0
        %704 = vmatpush2.msra.mxu0 0.0
        %705 = vmatprep.subr.mxu0 0.0
        %706 = vmatpush2.msra.mxu0 0.0
        %707 = vmatprep.subr.mxu0 0.0
        %708 = vmatpush2.msra.mxu0 0.0
        %709 = vmatprep.subr.mxu0 0.0
        %710 = vmatpush2.msra.mxu0 0.0
        %711 = vmatprep.subr.mxu0 0.0
        %712 = vmatpush2.msra.mxu0 0.0
        %713 = vmatprep.mubr.f32.mxu0 0.0
        %714 = vmatmul.mubr.f32.gmra.mxu0 %v638
        %v715 = vpop.f32.mrf.mxu0
        %v716 = vadd.f32 %v619, %v715
        %v717 = vpop.f32.mrf.mxu0
        %v718 = vadd.f32 %v619, %v717
        %719 = vmatprep.mubr.f32.mxu0 0.0
        %720 = vmatmul.mubr.f32.gmra.mxu0 %v641
        %v721 = vpop.f32.mrf.mxu0
        %v722 = vadd.f32 %v624, %v721
        %v723 = vpop.f32.mrf.mxu0
        %v724 = vadd.f32 %v624, %v723
        %725 = vmatprep.mubr.f32.mxu0 0.0
        %726 = vmatmul.mubr.f32.gmra.mxu0 %v644
        %v727 = vpop.f32.mrf.mxu0
        %v728 = vadd.f32 %v629, %v727
        %v729 = vpop.f32.mrf.mxu0
        %v730 = vadd.f32 %v629, %v729
        %731 = vmatprep.mubr.f32.mxu0 0.0
        %732 = vmatmul.mubr.f32.gmra.mxu0 %v647
        %v733 = vpop.f32.mrf.mxu0
        %v734 = vadd.f32 %v634, %v733
        %v735 = vpop.f32.mrf.mxu0
        %v736 = vadd.f32 %v634, %v735
        %737 = vdwg.mxu0
        %738 = vmatprep.subr.mxu0 0.0
        %739 = vmatpush1.msra.mxu0 0.0
        %740 = vmatprep.subr.mxu0 0.0
        %741 = vmatpush1.msra.mxu0 0.0
        %742 = vmatprep.subr.mxu0 0.0
        %743 = vmatpush1.msra.mxu0 0.0
        %744 = vmatprep.subr.mxu0 0.0
        %745 = vmatpush1.msra.mxu0 0.0
        %746 = vmatprep.subr.mxu0 0.0
        %747 = vmatpush1.msra.mxu0 0.0
        %748 = vmatprep.subr.mxu0 0.0
        %749 = vmatpush1.msra.mxu0 0.0
        %750 = vmatprep.subr.mxu0 0.0
        %751 = vmatpush1.msra.mxu0 0.0
        %752 = vmatprep.subr.mxu0 0.0
        %753 = vmatpush1.msra.mxu0 0.0
        %754 = vmatprep.subr.mxu0 0.0
        %755 = vmatpush1.msra.mxu0 0.0
        %756 = vmatprep.subr.mxu0 0.0
        %757 = vmatpush1.msra.mxu0 0.0
        %758 = vmatprep.subr.mxu0 0.0
        %759 = vmatpush1.msra.mxu0 0.0
        %760 = vmatprep.subr.mxu0 0.0
        %761 = vmatpush1.msra.mxu0 0.0
        %762 = vmatprep.subr.mxu0 %v615
        %763 = vmatpush1.msra.mxu0 %v614
        %764 = vmatprep.subr.mxu0 %v611
        %765 = vmatpush1.msra.mxu0 %v610
        %766 = vmatprep.subr.mxu0 %v607
        %767 = vmatpush1.msra.mxu0 %v606
        %768 = vmatprep.subr.mxu0 %v603
        %769 = vmatpush1.msra.mxu0 %v602
        %770 = vmatprep.subr.mxu0 0.0
        %771 = vmatpush2.msra.mxu0 0.0
        %772 = vmatprep.subr.mxu0 0.0
        %773 = vmatpush2.msra.mxu0 0.0
        %774 = vmatprep.subr.mxu0 0.0
        %775 = vmatpush2.msra.mxu0 0.0
        %776 = vmatprep.subr.mxu0 0.0
        %777 = vmatpush2.msra.mxu0 0.0
        %778 = vmatprep.subr.mxu0 0.0
        %779 = vmatpush2.msra.mxu0 0.0
        %780 = vmatprep.subr.mxu0 0.0
        %781 = vmatpush2.msra.mxu0 0.0
        %782 = vmatprep.subr.mxu0 0.0
        %783 = vmatpush2.msra.mxu0 0.0
        %784 = vmatprep.subr.mxu0 0.0
        %785 = vmatpush2.msra.mxu0 0.0
        %786 = vmatprep.subr.mxu0 0.0
        %787 = vmatpush2.msra.mxu0 0.0
        %788 = vmatprep.subr.mxu0 0.0
        %789 = vmatpush2.msra.mxu0 0.0
        %790 = vmatprep.subr.mxu0 0.0
        %791 = vmatpush2.msra.mxu0 0.0
        %792 = vmatprep.subr.mxu0 0.0
        %793 = vmatpush2.msra.mxu0 0.0
        %794 = vmatprep.subr.mxu0 0.0
        %795 = vmatpush2.msra.mxu0 0.0
        %796 = vmatprep.subr.mxu0 0.0
        %797 = vmatpush2.msra.mxu0 0.0
        %798 = vmatprep.subr.mxu0 0.0
        %799 = vmatpush2.msra.mxu0 0.0
        %800 = vmatprep.subr.mxu0 0.0
        %801 = vmatpush2.msra.mxu0 0.0
        %802 = vmatprep.mubr.f32.mxu0 0.0
        %803 = vmatmul.mubr.f32.gmra.mxu0 %v638
        %v804 = vpop.f32.mrf.mxu0
        %v805 = vadd.f32 %v619, %v804
        %v806 = vpop.f32.mrf.mxu0
        %v807 = vadd.f32 %v619, %v806
        %808 = vmatprep.mubr.f32.mxu0 0.0
        %809 = vmatmul.mubr.f32.gmra.mxu0 %v641
        %v810 = vpop.f32.mrf.mxu0
        %v811 = vadd.f32 %v624, %v810
        %v812 = vpop.f32.mrf.mxu0
        %v813 = vadd.f32 %v624, %v812
        %814 = vmatprep.mubr.f32.mxu0 0.0
        %815 = vmatmul.mubr.f32.gmra.mxu0 %v644
        %v816 = vpop.f32.mrf.mxu0
        %v817 = vadd.f32 %v629, %v816
        %v818 = vpop.f32.mrf.mxu0
        %v819 = vadd.f32 %v629, %v818
        %820 = vmatprep.mubr.f32.mxu0 0.0
        %821 = vmatmul.mubr.f32.gmra.mxu0 %v647
        %v822 = vpop.f32.mrf.mxu0
        %v823 = vadd.f32 %v634, %v822
        %v824 = vpop.f32.mrf.mxu0
        %v825 = vadd.f32 %v634, %v824
        %826 = vdwg.mxu0
        %v827 = vmax.f32 %v716, 0.0
        %v828 = vmax.f32 %v718, 0.0
        %v829 = vmax.f32 %v805, 0.0
        %v830 = vmax.f32 %v807, 0.0
        %v831 = vmax.f32 %v722, 0.0
        %v832 = vmax.f32 %v724, 0.0
        %v833 = vmax.f32 %v811, 0.0
        %v834 = vmax.f32 %v813, 0.0
        %v835 = vmax.f32 %v728, 0.0
        %v836 = vmax.f32 %v730, 0.0
        %v837 = vmax.f32 %v817, 0.0
        %v838 = vmax.f32 %v819, 0.0
        %v839 = vmax.f32 %v734, 0.0
        %v840 = vmax.f32 %v736, 0.0
        %v841 = vmax.f32 %v823, 0.0
        %v842 = vmax.f32 %v825, 0.0
        %844 = vset.pattern.permute.xlu0 0
        %845 = vperm.xlu0 %844, %v374
        %v846 = vpop.permute.xlu0 %845
        %849 = vset.pattern.permute.xlu0 0
        %850 = vperm.xlu0 %849, %v375
        %v851 = vpop.permute.xlu0 %850
        %v854 = vsel %vm636, %v372, 0
        %v857 = vsel %vm636, %v373, 0
        %859 = vmatprep.subr.mxu0 0.0
        %860 = vmatpush1.msra.mxu0 0.0
        %861 = vmatprep.subr.mxu0 0.0
        %862 = vmatpush1.msra.mxu0 0.0
        %863 = vmatprep.subr.mxu0 0.0
        %864 = vmatpush1.msra.mxu0 0.0
        %865 = vmatprep.subr.mxu0 0.0
        %866 = vmatpush1.msra.mxu0 0.0
        %867 = vmatprep.subr.mxu0 0.0
        %868 = vmatpush1.msra.mxu0 0.0
        %869 = vmatprep.subr.mxu0 0.0
        %870 = vmatpush1.msra.mxu0 0.0
        %871 = vmatprep.subr.mxu0 0.0
        %872 = vmatpush1.msra.mxu0 0.0
        %873 = vmatprep.subr.mxu0 0.0
        %874 = vmatpush1.msra.mxu0 0.0
        %875 = vmatprep.subr.mxu0 0.0
        %876 = vmatpush1.msra.mxu0 0.0
        %877 = vmatprep.subr.mxu0 0.0
        %878 = vmatpush1.msra.mxu0 0.0
        %879 = vmatprep.subr.mxu0 0.0
        %880 = vmatpush1.msra.mxu0 0.0
        %881 = vmatprep.subr.mxu0 0.0
        %882 = vmatpush1.msra.mxu0 0.0
        %883 = vmatprep.subr.mxu0 %v840
        %884 = vmatpush1.msra.mxu0 %v839
        %885 = vmatprep.subr.mxu0 %v836
        %886 = vmatpush1.msra.mxu0 %v835
        %887 = vmatprep.subr.mxu0 %v832
        %888 = vmatpush1.msra.mxu0 %v831
        %889 = vmatprep.subr.mxu0 %v828
        %890 = vmatpush1.msra.mxu0 %v827
        %891 = vmatprep.subr.mxu0 0.0
        %892 = vmatpush2.msra.mxu0 0.0
        %893 = vmatprep.subr.mxu0 0.0
        %894 = vmatpush2.msra.mxu0 0.0
        %895 = vmatprep.subr.mxu0 0.0
        %896 = vmatpush2.msra.mxu0 0.0
        %897 = vmatprep.subr.mxu0 0.0
        %898 = vmatpush2.msra.mxu0 0.0
        %899 = vmatprep.subr.mxu0 0.0
        %900 = vmatpush2.msra.mxu0 0.0
        %901 = vmatprep.subr.mxu0 0.0
        %902 = vmatpush2.msra.mxu0 0.0
        %903 = vmatprep.subr.mxu0 0.0
        %904 = vmatpush2.msra.mxu0 0.0
        %905 = vmatprep.subr.mxu0 0.0
        %906 = vmatpush2.msra.mxu0 0.0
        %907 = vmatprep.subr.mxu0 0.0
        %908 = vmatpush2.msra.mxu0 0.0
        %909 = vmatprep.subr.mxu0 0.0
        %910 = vmatpush2.msra.mxu0 0.0
        %911 = vmatprep.subr.mxu0 0.0
        %912 = vmatpush2.msra.mxu0 0.0
        %913 = vmatprep.subr.mxu0 0.0
        %914 = vmatpush2.msra.mxu0 0.0
        %915 = vmatprep.subr.mxu0 0.0
        %916 = vmatpush2.msra.mxu0 0.0
        %917 = vmatprep.subr.mxu0 0.0
        %918 = vmatpush2.msra.mxu0 0.0
        %919 = vmatprep.subr.mxu0 0.0
        %920 = vmatpush2.msra.mxu0 0.0
        %921 = vmatprep.subr.mxu0 0.0
        %922 = vmatpush2.msra.mxu0 0.0
        %923 = vmatprep.mubr.f32.mxu0 0.0
        %924 = vmatmul.mubr.f32.gmra.mxu0 %v854
        %v925 = vpop.f32.mrf.mxu0
        %v926 = vadd.f32 %v846, %v925
        %v927 = vpop.f32.mrf.mxu0
        %v928 = vadd.f32 %v846, %v927
        %929 = vmatprep.mubr.f32.mxu0 0.0
        %930 = vmatmul.mubr.f32.gmra.mxu0 %v857
        %v931 = vpop.f32.mrf.mxu0
        %v932 = vadd.f32 %v851, %v931
        %v933 = vpop.f32.mrf.mxu0
        %v934 = vadd.f32 %v851, %v933
        %935 = vdwg.mxu0
        %936 = vmatprep.subr.mxu0 0.0
        %937 = vmatpush1.msra.mxu0 0.0
        %938 = vmatprep.subr.mxu0 0.0
        %939 = vmatpush1.msra.mxu0 0.0
        %940 = vmatprep.subr.mxu0 0.0
        %941 = vmatpush1.msra.mxu0 0.0
        %942 = vmatprep.subr.mxu0 0.0
        %943 = vmatpush1.msra.mxu0 0.0
        %944 = vmatprep.subr.mxu0 0.0
        %945 = vmatpush1.msra.mxu0 0.0
        %946 = vmatprep.subr.mxu0 0.0
        %947 = vmatpush1.msra.mxu0 0.0
        %948 = vmatprep.subr.mxu0 0.0
        %949 = vmatpush1.msra.mxu0 0.0
        %950 = vmatprep.subr.mxu0 0.0
        %951 = vmatpush1.msra.mxu0 0.0
        %952 = vmatprep.subr.mxu0 0.0
        %953 = vmatpush1.msra.mxu0 0.0
        %954 = vmatprep.subr.mxu0 0.0
        %955 = vmatpush1.msra.mxu0 0.0
        %956 = vmatprep.subr.mxu0 0.0
        %957 = vmatpush1.msra.mxu0 0.0
        %958 = vmatprep.subr.mxu0 0.0
        %959 = vmatpush1.msra.mxu0 0.0
        %960 = vmatprep.subr.mxu0 %v842
        %961 = vmatpush1.msra.mxu0 %v841
        %962 = vmatprep.subr.mxu0 %v838
        %963 = vmatpush1.msra.mxu0 %v837
        %964 = vmatprep.subr.mxu0 %v834
        %965 = vmatpush1.msra.mxu0 %v833
        %966 = vmatprep.subr.mxu0 %v830
        %967 = vmatpush1.msra.mxu0 %v829
        %968 = vmatprep.subr.mxu0 0.0
        %969 = vmatpush2.msra.mxu0 0.0
        %970 = vmatprep.subr.mxu0 0.0
        %971 = vmatpush2.msra.mxu0 0.0
        %972 = vmatprep.subr.mxu0 0.0
        %973 = vmatpush2.msra.mxu0 0.0
        %974 = vmatprep.subr.mxu0 0.0
        %975 = vmatpush2.msra.mxu0 0.0
        %976 = vmatprep.subr.mxu0 0.0
        %977 = vmatpush2.msra.mxu0 0.0
        %978 = vmatprep.subr.mxu0 0.0
        %979 = vmatpush2.msra.mxu0 0.0
        %980 = vmatprep.subr.mxu0 0.0
        %981 = vmatpush2.msra.mxu0 0.0
        %982 = vmatprep.subr.mxu0 0.0
        %983 = vmatpush2.msra.mxu0 0.0
        %984 = vmatprep.subr.mxu0 0.0
        %985 = vmatpush2.msra.mxu0 0.0
        %986 = vmatprep.subr.mxu0 0.0
        %987 = vmatpush2.msra.mxu0 0.0
        %988 = vmatprep.subr.mxu0 0.0
        %989 = vmatpush2.msra.mxu0 0.0
        %990 = vmatprep.subr.mxu0 0.0
        %991 = vmatpush2.msra.mxu0 0.0
        %992 = vmatprep.subr.mxu0 0.0
        %993 = vmatpush2.msra.mxu0 0.0
        %994 = vmatprep.subr.mxu0 0.0
        %995 = vmatpush2.msra.mxu0 0.0
        %996 = vmatprep.subr.mxu0 0.0
        %997 = vmatpush2.msra.mxu0 0.0
        %998 = vmatprep.subr.mxu0 0.0
        %999 = vmatpush2.msra.mxu0 0.0
        %1000 = vmatprep.mubr.f32.mxu0 0.0
        %1001 = vmatmul.mubr.f32.gmra.mxu0 %v854
        %v1002 = vpop.f32.mrf.mxu0
        %v1003 = vadd.f32 %v846, %v1002
        %v1004 = vpop.f32.mrf.mxu0
        %v1005 = vadd.f32 %v846, %v1004
        %1006 = vmatprep.mubr.f32.mxu0 0.0
        %1007 = vmatmul.mubr.f32.gmra.mxu0 %v857
        %v1008 = vpop.f32.mrf.mxu0
        %v1009 = vadd.f32 %v851, %v1008
        %v1010 = vpop.f32.mrf.mxu0
        %v1011 = vadd.f32 %v851, %v1010
        %1012 = vdwg.mxu0
        %1013 = vst [vmem:[%s334] sm:$0xff] %v926
        %1014 = vst [vmem:[%s334 + $0x8] sm:$0xff] %v928
        %1015 = vst [vmem:[%s334 + $0x10] sm:$0xff] %v1003
        %1016 = vst [vmem:[%s334 + $0x18] sm:$0xff] %v1005
        %1017 = vst [vmem:[%s334 + $0x20] sm:$0xff] %v932
        %1018 = vst [vmem:[%s334 + $0x28] sm:$0xff] %v934
        %1019 = vst [vmem:[%s334 + $0x30] sm:$0xff] %v1009
        %1020 = vst [vmem:[%s334 + $0x38] sm:$0xff] %v1011
        %v1021 = vmax.f32 %v926, 0.0
        %v1022 = vmax.f32 %v928, 0.0
        %v1023 = vmax.f32 %v1003, 0.0
        %v1024 = vmax.f32 %v1005, 0.0
        %v1025 = vand.u32 2147483647, %v926
        %v1026 = vand.u32 2147483647, %v928
        %v1027 = vand.u32 2147483647, %v1003
        %v1028 = vand.u32 2147483647, %v1005
        %v1029 = vsub.f32 0.0, %v1025
        %v1030 = vsub.f32 0.0, %v1026
        %v1031 = vsub.f32 0.0, %v1027
        %v1032 = vsub.f32 0.0, %v1028
        %v1033 = vmul.f32 %v1029, 1.442695
        %v1034 = vpow.pop %v1033
        %v1035 = vmul.f32 %v1030, 1.442695
        %v1036 = vpow.pop %v1035
        %v1037 = vmul.f32 %v1031, 1.442695
        %v1038 = vpow.pop %v1037
        %v1039 = vmul.f32 %v1032, 1.442695
        %v1040 = vpow.pop %v1039
        %v1041 = vadd.f32 %v1034, 1.0
        %v1042 = vlog2.pop %v1041
        %v1043 = vmul.f32 %v1042, 0.6931472
        %v1044 = vmul.f32 -0.5, %v1034
        %v1045 = vadd.f32 %v1044, 1.0
        %v1046 = vmul.f32 %v1045, %v1034
        %v1047 = vand.u32 2147483647, %v1034
        %vm1048 = vcmp.lt.f32.partialorder %v1047, 0.0004427343
        %v1049 = vsel %vm1048, %v1046, %v1043
        %v1050 = vadd.f32 %v1036, 1.0
        %v1051 = vlog2.pop %v1050
        %v1052 = vmul.f32 %v1051, 0.6931472
        %v1053 = vmul.f32 -0.5, %v1036
        %v1054 = vadd.f32 %v1053, 1.0
        %v1055 = vmul.f32 %v1054, %v1036
        %v1056 = vand.u32 2147483647, %v1036
        %vm1057 = vcmp.lt.f32.partialorder %v1056, 0.0004427343
        %v1058 = vsel %vm1057, %v1055, %v1052
        %v1059 = vadd.f32 %v1038, 1.0
        %v1060 = vlog2.pop %v1059
        %v1061 = vmul.f32 %v1060, 0.6931472
        %v1062 = vmul.f32 -0.5, %v1038
        %v1063 = vadd.f32 %v1062, 1.0
        %v1064 = vmul.f32 %v1063, %v1038
        %v1065 = vand.u32 2147483647, %v1038
        %vm1066 = vcmp.lt.f32.partialorder %v1065, 0.0004427343
        %v1067 = vsel %vm1066, %v1064, %v1061
        %v1068 = vadd.f32 %v1040, 1.0
        %v1069 = vlog2.pop %v1068
        %v1070 = vmul.f32 %v1069, 0.6931472
        %v1071 = vmul.f32 -0.5, %v1040
        %v1072 = vadd.f32 %v1071, 1.0
        %v1073 = vmul.f32 %v1072, %v1040
        %v1074 = vand.u32 2147483647, %v1040
        %vm1075 = vcmp.lt.f32.partialorder %v1074, 0.0004427343
        %v1076 = vsel %vm1075, %v1073, %v1070
        %v1077 = vadd.f32 %v1021, %v1049
        %v1078 = vadd.f32 %v1022, %v1058
        %v1079 = vadd.f32 %v1023, %v1067
        %v1080 = vadd.f32 %v1024, %v1076
        %v1085 = vcombine.low %v1077, %v1078
        %v1086 = vcombine.low %v1079, %v1080
        %v1088 = vunpack.c.l.s4 1966171168
        %v1089 = vunpack.c.0.s8 %v1088
        %v1090 = vlaneseq
        %v1091 = vshrl.u32 %v1090, 7
        %v1092 = vsub.s32 %v1089, %v1091
        %v1093 = vrot.slane %v1085, %v1092
        %v1095 = vunpack.c.l.s4 1966171168
        %v1096 = vunpack.c.0.s8 %v1095
        %v1097 = vlaneseq
        %v1098 = vshrl.u32 %v1097, 7
        %v1099 = vsub.s32 %v1096, %v1098
        %v1100 = vrot.slane %v1086, %v1099
        %v1101 = vcombine.low %v1093, %v1100
        %v1103 = vunpack.c.l.s4 1966171168
        %v1104 = vunpack.c.0.s8 %v1103
        %v1105 = vlaneseq
        %v1106 = vshrl.u32 %v1105, 7
        %v1107 = vsub.s32 %v1104, %v1106
        %v1108 = vrot.slane %v1101, %v1107
        %v1110 = vlaneseq
        %vm1111 = vcmp.ge.s32.totalorder %v1110, 0
        %vm1112 = vcmp.lt.s32.totalorder %v1110, 512
        %vm1113 = vmand %vm1111, %vm1112
        %1114 = vst.msk [vmem:[%s346] sm:$0xf] %vm1113, %v1108
        %s1115 = sand.u32 %s180, 1
        %s1116 = sand.u32 %s180, 1
        %s1117 = smul.addr %s1116, 64
        %s1118 = scalar_lea.vmem [#allocation3], %s1117
        %s1119 = smul.u32 4, %s20
        %p1120 = scmp.lt.s32.totalorder %s1119, 7
        %s1121 = scalar_select %p1120, %s1119, 7
        %s1122 = scalar_lea.vmem %s8, %s1121
        // Predicated region
        $region72: #{_lambda_.1} parent=66 // pred_check
          %p1123 = pneg %p190
        $region73: #{_lambda_.1} parent=66 // pred_check_branch
          %1125 = sbr.rel (%p1123) target = $region75
        $region74: #{_lambda_.1} parent=66 // pred_region
          %s1126 = smul.u32 4, %s20
          %s1127 = smul.addr %s1126, 8
          %s1128 = scalar_lea.vmem %s7, %s1127
          // Predicated region
          $region76: #{_lambda_.1} parent=74 // pred_check
            _
          $region77: #{_lambda_.1} parent=74 // pred_check_branch
            %1130 = sbr.rel (0) target = $region79
          $region78: #{_lambda_.1} parent=74 // pred_region
            // Predicated region
            $region80: #{_lambda_.1} parent=78 // pred_check
              _
            $region81: #{_lambda_.1} parent=78 // pred_check_branch
              %1132 = sbr.rel (0) target = $region83
            $region82: #{_lambda_.1} parent=78 // pred_region
              loop: start=0, step=1, limit=1
              $region84: #{_lambda_.1} parent=82 // loop_pre_header
                _
              $region85: #{_lambda_.1} parent=82 // loop_header
                %s1134 = sphi 0, %s1138
                %p1135 = scmp.ge.s32.totalorder %s1134, 1
                %s1139 = sphi %s1118, %s1118
                %s1140 = sphi %s1128, %s1128
              $region86: #{_lambda_.1} parent=82 // loop_header_branch
                %1137 = sbr.rel (%p1135) target = $region90
              $region87: #{_lambda_.1} parent=82 // loop_body
                %v1141 = vld [vmem:[%s1139] sm:$0xff]
                %1142 = vst [vmem:[%s1140] sm:$0xff] %v1141
                %v1143 = vld [vmem:[%s1139 + $0x8] sm:$0xff]
                %1144 = vst [vmem:[%s1140 + $0x8] sm:$0xff] %v1143
                %v1145 = vld [vmem:[%s1139 + $0x10] sm:$0xff]
                %1146 = vst [vmem:[%s1140 + $0x10] sm:$0xff] %v1145
                %v1147 = vld [vmem:[%s1139 + $0x18] sm:$0xff]
                %1148 = vst [vmem:[%s1140 + $0x18] sm:$0xff] %v1147
                %v1149 = vld [vmem:[%s1139 + $0x20] sm:$0xff]
                %1150 = vst [vmem:[%s1140 + $0x40] sm:$0xff] %v1149
                %v1151 = vld [vmem:[%s1139 + $0x28] sm:$0xff]
                %1152 = vst [vmem:[%s1140 + $0x48] sm:$0xff] %v1151
                %v1153 = vld [vmem:[%s1139 + $0x30] sm:$0xff]
                %1154 = vst [vmem:[%s1140 + $0x50] sm:$0xff] %v1153
                %v1155 = vld [vmem:[%s1139 + $0x38] sm:$0xff]
                %1156 = vst [vmem:[%s1140 + $0x58] sm:$0xff] %v1155
              $region88: #{_lambda_.1} parent=82 // loop_footer
                %s1138 = sadd.s32 1, %s1134
              $region89: #{_lambda_.1} parent=82 // loop_footer_branch
                %1133 = sbr.rel target = $region85
              $region90: #{_lambda_.1} parent=82 // loop_exit
                _
            $region83: #{_lambda_.1} parent=78 // pred_fallthru
              _
            // Predicated region
            $region91: #{_lambda_.1} parent=78 // pred_check
              _
            $region92: #{_lambda_.1} parent=78 // pred_check_branch
              %1158 = sbr.rel target = $region94
            $region93: #{_lambda_.1} parent=78 // pred_region
              _
            $region94: #{_lambda_.1} parent=78 // pred_fallthru
              _
          $region79: #{_lambda_.1} parent=74 // pred_fallthru
            _
          %1159 = vnop
        $region75: #{_lambda_.1} parent=66 // pred_fallthru
          _
        // Predicated region
        $region95: #{_lambda_.1} parent=66 // pred_check
          %p1160 = pneg %p216
        $region96: #{_lambda_.1} parent=66 // pred_check_branch
          %1162 = sbr.rel (%p1160) target = $region98
        $region97: #{_lambda_.1} parent=66 // pred_region
          %s1163 = smul.u32 4, %s20
        $region98: #{_lambda_.1} parent=66 // pred_fallthru
          _
      $region67: #{_lambda_.1} parent=5 // pred_fallthru
        _
      %p1164 = scmp.le.s32.totalorder 2, %s15
      // Predicated region
      $region99: #{_lambda_.1} parent=5 // pred_check
        %p1165 = pneg %p1164
      $region100: #{_lambda_.1} parent=5 // pred_check_branch
        %1167 = sbr.rel (%p1165) target = $region102
      $region101: #{_lambda_.1} parent=5 // pred_region
        %s1168 = ssub.s32 %s15, 2
        // Predicated region
        $region103: #{_lambda_.1} parent=101 // pred_check
          %p1169 = pneg %p196
        $region104: #{_lambda_.1} parent=101 // pred_check_branch
          %1171 = sbr.rel (%p1169) target = $region106
        $region105: #{_lambda_.1} parent=101 // pred_region
          %s1172 = sand.u32 %s181, 1
          %s1173 = sand.u32 %s181, 1
          %s1174 = smul.addr %s1173, 64
          %s1175 = scalar_lea.vmem [#allocation3], %s1174
        $region106: #{_lambda_.1} parent=101 // pred_fallthru
          _
        // Predicated region
        $region107: #{_lambda_.1} parent=101 // pred_check
          %p1176 = pneg %p222
        $region108: #{_lambda_.1} parent=101 // pred_check_branch
          %1178 = sbr.rel (%p1176) target = $region110
        $region109: #{_lambda_.1} parent=101 // pred_region
          %s1179 = smul.u32 4, %s21
          %p1180 = scmp.lt.s32.totalorder %s1179, 7
          %s1181 = scalar_select %p1180, %s1179, 7
          %s1182 = scalar_lea.vmem %s8, %s1181
        $region110: #{_lambda_.1} parent=101 // pred_fallthru
          _
      $region102: #{_lambda_.1} parent=5 // pred_fallthru
        _
    $region6: #{_lambda_.1} parent=1 // loop_footer
      %s19 = sadd.s32 1, %s15
    $region7: #{_lambda_.1} parent=1 // loop_footer_branch
      %14 = sbr.rel target = $region3
    $region8: #{_lambda_.1} parent=1 // loop_exit
      _

</llo_original>
